<compile_context>
chip_gen: v6e
topology: v6e:2x2x1
jax: 0.10.0
libtpu: 0.0.40
codegen_flags: <defaults>
</compile_context>

<pallas_src>
import functools

import jax
import jax.numpy as jnp
from jax.experimental import pallas as pl
from jax.experimental.pallas import tpu as pltpu


def _hidden_layer_loss_kernel(total_batch, tile_b,
                              teacher_ref, student_ref, wt_ref, b_ref, out_ref):
    """One batch tile: partial sum of squared (student @ Wt + b - teacher)."""
    i = pl.program_id(0)

    student = student_ref[...].astype(jnp.float32)     # [tile_b, student_dim]
    wt = wt_ref[...].astype(jnp.float32)               # [student_dim, teacher_dim]

    # Linear projection on the MXU with f32 accumulation, bias broadcast over rows.
    proj = jnp.dot(student, wt, preferred_element_type=jnp.float32)
    proj = proj + b_ref[...].astype(jnp.float32)       # [1, teacher_dim] -> broadcast

    diff = proj - teacher_ref[...].astype(jnp.float32)  # [tile_b, teacher_dim]

    # Mask rows belonging to the padded tail of the last tile.
    row_ids = jax.lax.broadcasted_iota(jnp.int32, diff.shape, 0) + i * tile_b
    sq = jnp.where(row_ids < total_batch, diff * diff, 0.0)

    # Per-tile partial sum; final mean happens in the JAX wrapper.
    out_ref[...] = jnp.sum(sq).reshape(1, 1, 1)


def hidden_layer_loss(teacher_hddn, student_hddn, weight, bias, *, tile_b=None):
    """Pallas equivalent of HiddenLayerLoss.forward (returns a scalar).

    weight: [teacher_dim, student_dim]  (PyTorch nn.Linear layout)
    bias:   [teacher_dim]
    """
    batch, teacher_dim = teacher_hddn.shape
    batch_s, student_dim = student_hddn.shape
    assert batch == batch_s
    assert weight.shape == (teacher_dim, student_dim)
    assert bias.shape == (teacher_dim,)

    # Batch tile: large enough to amortize the ~0.35us per-grid-step overhead,
    # but a multiple of 8 (f32 sublane) unless it covers the whole batch.
    # On v7x (64 MiB VMEM) halve this if teacher/student dims are large.
    if tile_b is None:
        tile_b = batch if batch <= 256 else 256
    if tile_b != batch:
        assert tile_b % 8 == 0, "batch tile must be a multiple of 8 (f32 sublane)"

    num_tiles = pl.cdiv(batch, tile_b)

    # Pre-transpose the Linear weight once so the kernel is a plain A @ B matmul.
    wt = jnp.transpose(weight)                # [student_dim, teacher_dim]
    b2d = bias.reshape(1, teacher_dim)

    kernel = functools.partial(_hidden_layer_loss_kernel, batch, tile_b)

    partial_sums = pl.pallas_call(
        kernel,
        out_shape=jax.ShapeDtypeStruct((num_tiles, 1, 1), jnp.float32),
        grid=(num_tiles,),
        in_specs=[
            pl.BlockSpec((tile_b, teacher_dim), lambda i: (i, 0)),       # teacher tile
            pl.BlockSpec((tile_b, student_dim), lambda i: (i, 0)),       # student tile
            pl.BlockSpec((student_dim, teacher_dim), lambda i: (0, 0)),  # W.T, resident
            pl.BlockSpec((1, teacher_dim), lambda i: (0, 0)),            # bias, resident
        ],
        out_specs=pl.BlockSpec((1, 1, 1), lambda i: (i, 0, 0)),
        compiler_params=pltpu.CompilerParams(
            # Independent per-tile partial sums -> batch axis can shard across
            # both TensorCores on v7x; no shared accumulator to serialize on.
            dimension_semantics=("parallel",),
        ),
    )(teacher_hddn, student_hddn, wt, b2d)

    # Mean over every element, using the *global* batch size (not the tile size).
    return jnp.sum(partial_sums) / (batch * teacher_dim)


def _hidden_layer_loss_ref(teacher_hddn, student_hddn, weight, bias):
    proj = student_hddn.astype(jnp.float32) @ weight.astype(jnp.float32).T
    proj = proj + bias.astype(jnp.float32)
    return jnp.mean((proj - teacher_hddn.astype(jnp.float32)) ** 2)


if __name__ == "__main__":
    # Small shapes; batch=12 with tile_b=8 exercises the padded-tail masking.
    batch, teacher_dim, student_dim = 12, 128, 64

    key = jax.random.PRNGKey(0)
    k_t, k_s, k_w, k_b = jax.random.split(key, 4)
    teacher = jax.random.normal(k_t, (batch, teacher_dim), dtype=jnp.float32)
    student = jax.random.normal(k_s, (batch, student_dim), dtype=jnp.float32)
    weight = 0.05 * jax.random.normal(k_w, (teacher_dim, student_dim), dtype=jnp.float32)
    bias = 0.05 * jax.random.normal(k_b, (teacher_dim,), dtype=jnp.float32)

    loss = hidden_layer_loss(teacher, student, weight, bias, tile_b=8)
    loss = jax.block_until_ready(loss)

    ref = _hidden_layer_loss_ref(teacher, student, weight, bias)
    assert jnp.allclose(loss, ref, rtol=1e-5, atol=1e-6), (loss, ref)

    print("KERNEL_OK")
</pallas_src>

<mosaic_0001>
module attributes {stable_mosaic.version = 11 : i64} {
  func.func @_hidden_layer_loss_kernel(%arg0: i32, %arg1: memref<8x128xf32, #tpu.memory_space<vmem>>, %arg2: memref<8x64xf32, #tpu.memory_space<vmem>>, %arg3: memref<64x128xf32, #tpu.memory_space<vmem>>, %arg4: memref<1x128xf32, #tpu.memory_space<vmem>>, %arg5: memref<1x1x1xf32, #tpu.memory_space<vmem>>) attributes {dimension_semantics = [#tpu.dimension_semantics<parallel>], iteration_bounds = array<i64: 2>, scalar_prefetch = 0 : i64, scratch_operands = 0 : i64, tpu.core_type = #tpu.core_type<tc>, window_params = [{transform_indices = @transform_0, window_bounds = array<i64: 8, 128>}, {transform_indices = @transform_1, window_bounds = array<i64: 8, 64>}, {pipeline_mode = #tpu.pipeline_mode<synchronous>, transform_indices = @transform_2, window_bounds = array<i64: 64, 128>}, {pipeline_mode = #tpu.pipeline_mode<synchronous>, transform_indices = @transform_3, window_bounds = array<i64: 1, 128>}, {transform_indices = @transform_4, window_bounds = array<i64: 1, 1, 1>}]} {
    %c0 = arith.constant 0 : index
    %c0_0 = arith.constant 0 : index
    %0 = vector.load %arg2[%c0, %c0_0] : memref<8x64xf32, #tpu.memory_space<vmem>>, vector<8x64xf32>
    %c0_1 = arith.constant 0 : index
    %c0_2 = arith.constant 0 : index
    %1 = vector.load %arg3[%c0_1, %c0_2] : memref<64x128xf32, #tpu.memory_space<vmem>>, vector<64x128xf32>
    %cst = arith.constant dense<0.000000e+00> : vector<8x128xf32>
    %2 = tpu.matmul %0, %1, %cst {dimension_numbers = #tpu.dot_dimension_numbers<[1], [0], [0], [1], [0, 0, 1, 1], [], []>} : vector<8x64xf32>, vector<64x128xf32>, vector<8x128xf32> -> vector<8x128xf32>
    %c0_3 = arith.constant 0 : index
    %c0_4 = arith.constant 0 : index
    %3 = vector.load %arg4[%c0_3, %c0_4] : memref<1x128xf32, #tpu.memory_space<vmem>>, vector<1x128xf32>
    %4 = vector.broadcast %3 : vector<1x128xf32> to vector<8x128xf32>
    %5 = arith.addf %2, %4 : vector<8x128xf32>
    %c0_5 = arith.constant 0 : index
    %c0_6 = arith.constant 0 : index
    %6 = vector.load %arg1[%c0_5, %c0_6] : memref<8x128xf32, #tpu.memory_space<vmem>>, vector<8x128xf32>
    %7 = arith.subf %5, %6 : vector<8x128xf32>
    %8 = tpu.iota {dimensions = array<i32: 0>} : vector<8x128xi32>
    %c8_i32 = arith.constant 8 : i32
    %9 = arith.muli %arg0, %c8_i32 : i32
    %10 = vector.broadcast %9 : i32 to vector<8x128xi32>
    %11 = arith.addi %8, %10 : vector<8x128xi32>
    %c12_i32 = arith.constant 12 : i32
    %12 = vector.broadcast %c12_i32 : i32 to vector<8x128xi32>
    %13 = arith.cmpi slt, %11, %12 : vector<8x128xi32>
    %14 = arith.mulf %7, %7 : vector<8x128xf32>
    %cst_7 = arith.constant 0.000000e+00 : f32
    %15 = vector.broadcast %cst_7 : f32 to vector<8x128xf32>
    %16 = arith.select %13, %14, %15 : vector<8x128xi1>, vector<8x128xf32>
    %17 = vector.shape_cast %16 : vector<8x128xf32> to vector<1x8x128xf32>
    %cst_8 = arith.constant dense<0.000000e+00> : vector<1xf32>
    %18 = vector.multi_reduction <add>, %17, %cst_8 [1, 2] : vector<1x8x128xf32> to vector<1xf32>
    %19 = vector.shape_cast %18 : vector<1xf32> to vector<1x1x1xf32>
    %20 = vector.extract %19[0, 0, 0] : f32 from vector<1x1x1xf32>
    %21 = vector.broadcast %20 : f32 to vector<1x1x1xf32>
    %c0_9 = arith.constant 0 : index
    %c0_10 = arith.constant 0 : index
    %c0_11 = arith.constant 0 : index
    %22 = vector.load %arg5[%c0_9, %c0_10, %c0_11] : memref<1x1x1xf32, #tpu.memory_space<vmem>>, vector<1x1x1xf32>
    tpu.vector_store %arg5[%c0_9, %c0_10, %c0_11], %21 {strides = array<i32>} : memref<1x1x1xf32, #tpu.memory_space<vmem>>, vector<1x1x1xf32>,
    return
  }
  func.func @transform_0(%arg0: i32) -> (i32, i32) {
    %c0_i32 = arith.constant 0 : i32
    %c0_i32_0 = arith.constant 0 : i32
    return %arg0, %c0_i32 : i32, i32
  }
  func.func @transform_1(%arg0: i32) -> (i32, i32) {
    %c0_i32 = arith.constant 0 : i32
    %c0_i32_0 = arith.constant 0 : i32
    return %arg0, %c0_i32 : i32, i32
  }
  func.func @transform_2(%arg0: i32) -> (i32, i32) {
    %c0_i32 = arith.constant 0 : i32
    %c0_i32_0 = arith.constant 0 : i32
    %c0_i32_1 = arith.constant 0 : i32
    return %c0_i32, %c0_i32_0 : i32, i32
  }
  func.func @transform_3(%arg0: i32) -> (i32, i32) {
    %c0_i32 = arith.constant 0 : i32
    %c0_i32_0 = arith.constant 0 : i32
    %c0_i32_1 = arith.constant 0 : i32
    return %c0_i32, %c0_i32_0 : i32, i32
  }
  func.func @transform_4(%arg0: i32) -> (i32, i32, i32) {
    %c0_i32 = arith.constant 0 : i32
    %c0_i32_0 = arith.constant 0 : i32
    %c0_i32_1 = arith.constant 0 : i32
    return %arg0, %c0_i32, %c0_i32_0 : i32, i32, i32
  }
}

</mosaic_0001>

<llo_original>
// kernel: tpu_custom_call.1
$region0: #{tpu_custom_call.1}
  #allocation0 [shape = 'u32[]', space=smem, size = 0x4, offset = 0x4, fixed_abs, tag = 'smem constant byte address 0x4 - core index']
  #allocation1 [shape = 'u32[144,128]{1,0:T(1,128)}', space=vmem, size = 0x12000, scoped, tag = 'internal scratch']
  %s0 = inlined_call_operand.hbm [shape: f32[12,128], index: 0, kind: input, shape index: {}]
  %s1 = inlined_call_operand.hbm [shape: f32[12,64], index: 1, kind: input, shape index: {}]
  %s2 = inlined_call_operand.hbm [shape: f32[64,128], index: 2, kind: input, shape index: {}]
  %s3 = inlined_call_operand.vmem [shape: f32[1,128], index: 3, kind: input, shape index: {}]
  %s4 = inlined_call_operand.vmem [shape: f32[2,1,1], index: 4, kind: output, shape index: {}]
  %s5 = sld [smem:[#allocation0]]
  $region61: #{tpu_custom_call.1} parent=0
    _
  %s7 = ssub.s32 1, %s5
  %s8 = scalar_select 0, %s7, %s5
  $region1: #{tpu_custom_call.1} parent=0
    #allocation2 [shape = 'u8[8192]{0}', space=vmem, size = 0x2000, scoped, tag = 'input window, operand 0']
    #allocation3 [shape = 's32[2]{0}', space=sflag, size = 0x8, scoped, tag = 'scoped memory for tpu_custom_call.1']
    #allocation4 [shape = 'u8[8192]{0}', space=vmem, size = 0x2000, scoped, tag = 'input window, operand 1']
    #allocation5 [shape = 's32[2]{0}', space=sflag, size = 0x8, scoped, tag = 'scoped memory for tpu_custom_call.1']
    #allocation6 [shape = 'u8[32768]{0}', space=vmem, size = 0x8000, scoped, tag = 'input window, operand 2, single buffered']
    %9 = vsyncpa [#allocation3], 0
    %s10 = scalar_lea.sflag [#allocation3], 1
    %11 = vsyncpa %s10, 0
    %12 = vsyncpa [#allocation5], 0
    %s13 = scalar_lea.sflag [#allocation5], 1
    %14 = vsyncpa %s13, 0
    loop: start=0, step=1, limit=4
    $region2: #{tpu_custom_call.1} parent=1 // loop_pre_header
      _
    $region3: #{tpu_custom_call.1} parent=1 // loop_header
      %s16 = sphi 0, %s20
      %p17 = scmp.ge.s32.totalorder %s16, 4
      %s26 = sphi 0, %s28
      %s29 = sphi 0, %s26
      %s30 = sphi 0, %s29
      %s46 = sphi 0, %s30
      %s52 = sphi 0, %s54
      %s55 = sphi 0, %s52
      %s56 = sphi 0, %s55
      %s72 = sphi 0, %s56
      %s76 = sphi 0, %s76
      %s78 = sphi 0, %s76
      %s79 = sphi 0, %s78
      %s93 = sphi 0, %s79
      %s97 = sphi 0, %s97
      %s99 = sphi 0, %s97
      %s100 = sphi 0, %s99
      %s114 = sphi 0, %s100
      %s120 = sphi 0, %s122
      %s123 = sphi 0, %s120
      %s124 = sphi 0, %s123
      %s140 = sphi 0, %s124
    $region4: #{tpu_custom_call.1} parent=1 // loop_header_branch
      %19 = sbr.rel (%p17) target = $region8
    $region5: #{tpu_custom_call.1} parent=1 // loop_body
      %s21 = ssub.s32 %s16, 1
      %s22 = ssub.s32 %s16, 2
      %s23 = sadd.s32 %s16, 1
      %s24 = ssub.s32 %s16, %s23
      %p25 = scmp.eq.s32.totalorder %s24, 0
      %s27 = sadd.s32 %s26, 1
      %s28 = scalar_select %p25, %s26, %s27
      %p31 = pneg %p25
      %p32 = scmp.eq.s32.totalorder %s16, 1
      %p33 = por %p31, %p32
      %p34 = scmp.ne.s32.totalorder %s26, %s29
      %p35 = scmp.eq.s32.totalorder %s16, 0
      %p36 = por %p34, %p35
      %p37 = scmp.ne.s32.totalorder %s26, %s29
      %p38 = scmp.eq.s32.totalorder %s21, 1
      %p39 = por %p37, %p38
      %p40 = scmp.ne.s32.totalorder %s29, %s30
      %p41 = scmp.eq.s32.totalorder %s21, 0
      %p42 = por %p40, %p41
      %p43 = scmp.ne.s32.totalorder %s29, %s30
      %p44 = scmp.eq.s32.totalorder %s22, 1
      %p45 = por %p43, %p44
      %p47 = scmp.ne.s32.totalorder %s30, %s46
      %p48 = scmp.eq.s32.totalorder %s22, 0
      %p49 = por %p47, %p48
      %s50 = ssub.s32 %s16, %s23
      %p51 = scmp.eq.s32.totalorder %s50, 0
      %s53 = sadd.s32 %s52, 1
      %s54 = scalar_select %p51, %s52, %s53
      %p57 = pneg %p51
      %p58 = scmp.eq.s32.totalorder %s16, 1
      %p59 = por %p57, %p58
      %p60 = scmp.ne.s32.totalorder %s52, %s55
      %p61 = scmp.eq.s32.totalorder %s16, 0
      %p62 = por %p60, %p61
      %p63 = scmp.ne.s32.totalorder %s52, %s55
      %p64 = scmp.eq.s32.totalorder %s21, 1
      %p65 = por %p63, %p64
      %p66 = scmp.ne.s32.totalorder %s55, %s56
      %p67 = scmp.eq.s32.totalorder %s21, 0
      %p68 = por %p66, %p67
      %p69 = scmp.ne.s32.totalorder %s55, %s56
      %p70 = scmp.eq.s32.totalorder %s22, 1
      %p71 = por %p69, %p70
      %p73 = scmp.ne.s32.totalorder %s56, %s72
      %p74 = scmp.eq.s32.totalorder %s22, 0
      %p75 = por %p73, %p74
      %s77 = sadd.s32 %s76, 1
      %p80 = scmp.eq.s32.totalorder %s16, 1
      %p81 = scmp.ne.s32.totalorder %s76, %s78
      %p82 = scmp.eq.s32.totalorder %s16, 0
      %p83 = por %p81, %p82
      %p84 = scmp.ne.s32.totalorder %s76, %s78
      %p85 = scmp.eq.s32.totalorder %s21, 1
      %p86 = por %p84, %p85
      %p87 = scmp.ne.s32.totalorder %s78, %s79
      %p88 = scmp.eq.s32.totalorder %s21, 0
      %p89 = por %p87, %p88
      %p90 = scmp.ne.s32.totalorder %s78, %s79
      %p91 = scmp.eq.s32.totalorder %s22, 1
      %p92 = por %p90, %p91
      %p94 = scmp.ne.s32.totalorder %s79, %s93
      %p95 = scmp.eq.s32.totalorder %s22, 0
      %p96 = por %p94, %p95
      %s98 = sadd.s32 %s97, 1
      %p101 = scmp.eq.s32.totalorder %s16, 1
      %p102 = scmp.ne.s32.totalorder %s97, %s99
      %p103 = scmp.eq.s32.totalorder %s16, 0
      %p104 = por %p102, %p103
      %p105 = scmp.ne.s32.totalorder %s97, %s99
      %p106 = scmp.eq.s32.totalorder %s21, 1
      %p107 = por %p105, %p106
      %p108 = scmp.ne.s32.totalorder %s99, %s100
      %p109 = scmp.eq.s32.totalorder %s21, 0
      %p110 = por %p108, %p109
      %p111 = scmp.ne.s32.totalorder %s99, %s100
      %p112 = scmp.eq.s32.totalorder %s22, 1
      %p113 = por %p111, %p112
      %p115 = scmp.ne.s32.totalorder %s100, %s114
      %p116 = scmp.eq.s32.totalorder %s22, 0
      %p117 = por %p115, %p116
      %s118 = ssub.s32 %s16, %s23
      %p119 = scmp.eq.s32.totalorder %s118, 0
      %s121 = sadd.s32 %s120, 1
      %s122 = scalar_select %p119, %s120, %s121
      %p125 = pneg %p119
      %p126 = scmp.eq.s32.totalorder %s16, 1
      %p127 = por %p125, %p126
      %p128 = scmp.ne.s32.totalorder %s120, %s123
      %p129 = scmp.eq.s32.totalorder %s16, 0
      %p130 = por %p128, %p129
      %p131 = scmp.ne.s32.totalorder %s120, %s123
      %p132 = scmp.eq.s32.totalorder %s21, 1
      %p133 = por %p131, %p132
      %p134 = scmp.ne.s32.totalorder %s123, %s124
      %p135 = scmp.eq.s32.totalorder %s21, 0
      %p136 = por %p134, %p135
      %p137 = scmp.ne.s32.totalorder %s123, %s124
      %p138 = scmp.eq.s32.totalorder %s22, 1
      %p139 = por %p137, %p138
      %p141 = scmp.ne.s32.totalorder %s124, %s140
      %p142 = scmp.eq.s32.totalorder %s22, 0
      %p143 = por %p141, %p142
      %p144 = scmp.le.s32.totalorder 1, %s16
      %p145 = scmp.lt.s32.totalorder %s16, 3
      %p146 = pnand %p144, %p145
      %p147 = pneg %p146
      // Predicated region
      $region9: #{tpu_custom_call.1} parent=5 // pred_check
        _
      $region10: #{tpu_custom_call.1} parent=5 // pred_check_branch
        %149 = sbr.rel (%p146) target = $region12
      $region11: #{tpu_custom_call.1} parent=5 // pred_region
        %s150 = ssub.s32 %s16, 1
        // Predicated region
        $region13: #{tpu_custom_call.1} parent=11 // pred_check
          %p151 = pneg %p89
        $region14: #{tpu_custom_call.1} parent=11 // pred_check_branch
          %153 = sbr.rel (%p151) target = $region16
        $region15: #{tpu_custom_call.1} parent=11 // pred_region
          %s155 = ssub.s32 1024, 1024
          %156 = vsyncadd [#allocation5], %s155
          %s157 = sshll.u32 [#allocation6], 4
          %s158 = int_to_ptr.vmem [resolvable:$true] %s157
          %163 = dma.hbm_to_vmem [thread:$0]  %s2, 1024, %s158, [#allocation5], 128, 128, 8
        $region16: #{tpu_custom_call.1} parent=11 // pred_fallthru
          _
        // Predicated region
        $region17: #{tpu_custom_call.1} parent=11 // pred_check
          %p164 = pneg %p110
        $region18: #{tpu_custom_call.1} parent=11 // pred_check_branch
          %166 = sbr.rel (%p164) target = $region20
        $region19: #{tpu_custom_call.1} parent=11 // pred_region
          _
        $region20: #{tpu_custom_call.1} parent=11 // pred_fallthru
          _
      $region12: #{tpu_custom_call.1} parent=5 // pred_fallthru
        _
      %p167 = scmp.lt.s32.totalorder %s16, 2
      // Predicated region
      $region21: #{tpu_custom_call.1} parent=5 // pred_check
        %p168 = pneg %p167
      $region22: #{tpu_custom_call.1} parent=5 // pred_check_branch
        %170 = sbr.rel (%p168) target = $region24
      $region23: #{tpu_custom_call.1} parent=5 // pred_region
        // Predicated region
        $region25: #{tpu_custom_call.1} parent=23 // pred_check
          %p171 = pneg %p36
        $region26: #{tpu_custom_call.1} parent=23 // pred_check_branch
          %173 = sbr.rel (%p171) target = $region28
        $region27: #{tpu_custom_call.1} parent=23 // pred_region
          %s174 = sand.u32 %s26, 1
          %s175 = scalar_lea.sflag [#allocation3], %s174
          %s176 = sand.u32 %s26, 1
          %s177 = smul.addr %s176, 8
          %s178 = scalar_lea.vmem [#allocation2], %s177
          %s180 = ssub.s32 128, 128
          %181 = vsyncadd %s175, %s180
          %s182 = smul.addr %s16, 128
          %s183 = scalar_lea.hbm %s0, %s182
          %s185 = sshll.u32 %s178, 4
          %s186 = int_to_ptr.vmem [resolvable:$true] %s185
          %188 = dma.hbm_to_vmem [thread:$0]  %s183, 128, %s186, %s175
        $region28: #{tpu_custom_call.1} parent=23 // pred_fallthru
          _
        // Predicated region
        $region29: #{tpu_custom_call.1} parent=23 // pred_check
          %p189 = pneg %p62
        $region30: #{tpu_custom_call.1} parent=23 // pred_check_branch
          %191 = sbr.rel (%p189) target = $region32
        $region31: #{tpu_custom_call.1} parent=23 // pred_region
          %s192 = sand.u32 %s16, 1
          %s193 = scalar_lea.sflag [#allocation5], %s192
          %s194 = sand.u32 %s52, 1
          %s195 = smul.addr %s194, 8
          %s196 = scalar_lea.vmem [#allocation4], %s195
          %s198 = ssub.s32 128, 128
          %199 = vsyncadd %s193, %s198
          %s200 = smul.addr %s16, 128
          %s201 = scalar_lea.hbm %s1, %s200
          %s203 = sshll.u32 %s196, 4
          %s204 = int_to_ptr.vmem [resolvable:$true] %s203
          %206 = dma.hbm_to_vmem [thread:$0]  %s201, 128, %s204, %s193
        $region32: #{tpu_custom_call.1} parent=23 // pred_fallthru
          _
      $region24: #{tpu_custom_call.1} parent=5 // pred_fallthru
        _
      %p207 = scmp.le.s32.totalorder 1, %s16
      %p208 = scmp.lt.s32.totalorder %s16, 3
      %p209 = pnand %p207, %p208
      %p210 = pneg %p209
      // Predicated region
      $region33: #{tpu_custom_call.1} parent=5 // pred_check
        _
      $region34: #{tpu_custom_call.1} parent=5 // pred_check_branch
        %212 = sbr.rel (%p209) target = $region36
      $region35: #{tpu_custom_call.1} parent=5 // pred_region
        %s213 = ssub.s32 %s16, 1
        %s214 = sand.u32 %s29, 1
        %s215 = scalar_lea.sflag [#allocation3], %s214
        %s216 = sand.u32 %s29, 1
        %s217 = smul.addr %s216, 8
        %s218 = scalar_lea.vmem [#allocation2], %s217
        // Predicated region
        $region37: #{tpu_custom_call.1} parent=35 // pred_check
          %p219 = pneg %p42
        $region38: #{tpu_custom_call.1} parent=35 // pred_check_branch
          %221 = sbr.rel (%p219) target = $region40
        $region39: #{tpu_custom_call.1} parent=35 // pred_region
          %222 = dma.done %s215, 128
        $region40: #{tpu_custom_call.1} parent=35 // pred_fallthru
          _
        %s223 = sand.u32 %s21, 1
        %s224 = scalar_lea.sflag [#allocation5], %s223
        %s225 = sand.u32 %s55, 1
        %s226 = smul.addr %s225, 8
        %s227 = scalar_lea.vmem [#allocation4], %s226
        // Predicated region
        $region41: #{tpu_custom_call.1} parent=35 // pred_check
          %p228 = pneg %p68
        $region42: #{tpu_custom_call.1} parent=35 // pred_check_branch
          %230 = sbr.rel (%p228) target = $region44
        $region43: #{tpu_custom_call.1} parent=35 // pred_region
          %231 = dma.done %s224, 128
        $region44: #{tpu_custom_call.1} parent=35 // pred_fallthru
          _
        // Predicated region
        $region45: #{tpu_custom_call.1} parent=35 // pred_check
          %p232 = pneg %p89
        $region46: #{tpu_custom_call.1} parent=35 // pred_check_branch
          %234 = sbr.rel (%p232) target = $region48
        $region47: #{tpu_custom_call.1} parent=35 // pred_region
          %235 = dma.done [#allocation5], 1024
        $region48: #{tpu_custom_call.1} parent=35 // pred_fallthru
          _
        %s236 = sand.u32 %s29, 1
        %s237 = scalar_lea.sflag [#allocation3], %s236
        %s238 = sand.u32 %s29, 1
        %s239 = smul.addr %s238, 8
        %s240 = scalar_lea.vmem [#allocation2], %s239
        %p241 = pneg %p42
        %p242 = pneg %p39
        %s243 = sand.u32 %s21, 1
        %s244 = scalar_lea.sflag [#allocation5], %s243
        %s245 = sand.u32 %s55, 1
        %s246 = smul.addr %s245, 8
        %s247 = scalar_lea.vmem [#allocation4], %s246
        %p248 = pneg %p68
        %p249 = pneg %p65
        %p250 = pneg %p89
        %p251 = pneg %p86
        %p252 = pneg %p110
        %p253 = pneg %p107
        %p254 = pneg %p136
        %p255 = pneg %p133
        %p256 = scmp.lt.s32.totalorder %s21, 1
        %s257 = scalar_select %p256, %s21, 1
        %s258 = scalar_lea.vmem %s4, %s257
        %p259 = scmp.lt.s32.totalorder %s21, 1
        %s260 = scalar_select %p259, %s21, 1
        %s261 = scalar_lea.vmem %s4, %s260
        %v262 = vld [vmem:[%s227] sm:$0xff]
        %v263 = vld [vmem:[#allocation6] sm:$0xff]
        %v264 = vld [vmem:[#allocation6 + $0x8] sm:$0xff]
        %v265 = vld [vmem:[#allocation6 + $0x10] sm:$0xff]
        %v266 = vld [vmem:[#allocation6 + $0x18] sm:$0xff]
        %v267 = vld [vmem:[#allocation6 + $0x20] sm:$0xff]
        %v268 = vld [vmem:[#allocation6 + $0x28] sm:$0xff]
        %v269 = vld [vmem:[#allocation6 + $0x30] sm:$0xff]
        %v270 = vld [vmem:[#allocation6 + $0x38] sm:$0xff]
        %v271 = vld [vmem:[%s3] sm:$0x1]
        %v273 = vlaneseq
        %v274 = vshrl.u32 %v273, 7
        %v275 = vsub.s32 0, %v274
        %v276 = vrot.slane %v271, %v275
        %vm278 = vcmask 523264
        %v280 = vsel %vm278, %v262, 0
        %282 = vmatprep.subr.mxu0 0.0
        %283 = vmatpush1.msra.mxu0 0.0
        %284 = vmatprep.subr.mxu0 0.0
        %285 = vmatpush1.msra.mxu0 0.0
        %286 = vmatprep.subr.mxu0 0.0
        %287 = vmatpush1.msra.mxu0 0.0
        %288 = vmatprep.subr.mxu0 0.0
        %289 = vmatpush1.msra.mxu0 0.0
        %290 = vmatprep.subr.mxu0 0.0
        %291 = vmatpush1.msra.mxu0 0.0
        %292 = vmatprep.subr.mxu0 0.0
        %293 = vmatpush1.msra.mxu0 0.0
        %294 = vmatprep.subr.mxu0 0.0
        %295 = vmatpush1.msra.mxu0 0.0
        %296 = vmatprep.subr.mxu0 0.0
        %297 = vmatpush1.msra.mxu0 0.0
        %298 = vmatprep.subr.mxu0 0.0
        %299 = vmatpush1.msra.mxu0 %v270
        %300 = vmatprep.subr.mxu0 0.0
        %301 = vmatpush1.msra.mxu0 %v269
        %302 = vmatprep.subr.mxu0 0.0
        %303 = vmatpush1.msra.mxu0 %v268
        %304 = vmatprep.subr.mxu0 0.0
        %305 = vmatpush1.msra.mxu0 %v267
        %306 = vmatprep.subr.mxu0 0.0
        %307 = vmatpush1.msra.mxu0 %v266
        %308 = vmatprep.subr.mxu0 0.0
        %309 = vmatpush1.msra.mxu0 %v265
        %310 = vmatprep.subr.mxu0 0.0
        %311 = vmatpush1.msra.mxu0 %v264
        %312 = vmatprep.subr.mxu0 0.0
        %313 = vmatpush1.msra.mxu0 %v263
        %314 = vmatprep.subr.mxu0 0.0
        %315 = vmatpush2.msra.mxu0 0.0
        %316 = vmatprep.subr.mxu0 0.0
        %317 = vmatpush2.msra.mxu0 0.0
        %318 = vmatprep.subr.mxu0 0.0
        %319 = vmatpush2.msra.mxu0 0.0
        %320 = vmatprep.subr.mxu0 0.0
        %321 = vmatpush2.msra.mxu0 0.0
        %322 = vmatprep.subr.mxu0 0.0
        %323 = vmatpush2.msra.mxu0 0.0
        %324 = vmatprep.subr.mxu0 0.0
        %325 = vmatpush2.msra.mxu0 0.0
        %326 = vmatprep.subr.mxu0 0.0
        %327 = vmatpush2.msra.mxu0 0.0
        %328 = vmatprep.subr.mxu0 0.0
        %329 = vmatpush2.msra.mxu0 0.0
        %330 = vmatprep.subr.mxu0 0.0
        %331 = vmatpush2.msra.mxu0 0.0
        %332 = vmatprep.subr.mxu0 0.0
        %333 = vmatpush2.msra.mxu0 0.0
        %334 = vmatprep.subr.mxu0 0.0
        %335 = vmatpush2.msra.mxu0 0.0
        %336 = vmatprep.subr.mxu0 0.0
        %337 = vmatpush2.msra.mxu0 0.0
        %338 = vmatprep.subr.mxu0 0.0
        %339 = vmatpush2.msra.mxu0 0.0
        %340 = vmatprep.subr.mxu0 0.0
        %341 = vmatpush2.msra.mxu0 0.0
        %342 = vmatprep.subr.mxu0 0.0
        %343 = vmatpush2.msra.mxu0 0.0
        %344 = vmatprep.subr.mxu0 0.0
        %345 = vmatpush2.msra.mxu0 0.0
        %346 = vmatprep.mubr.f32.mxu0 0.0
        %347 = vmatmul.mubr.f32.gmra.mxu0 %v280
        %v348 = vpop.f32.mrf.mxu0
        %v349 = vadd.f32 %v276, %v348
        %v350 = vpop.f32.mrf.mxu0
        %351 = vdwg.mxu0
        %v352 = vld [vmem:[%s218] sm:$0xff]
        %v353 = vsub.f32 %v349, %v352
        %v354 = vlaneseq
        %v355 = vshrl.u32 %v354, 7
        %s356 = smul.u32 %s21, 8
        %v357 = vstv %s356
        %v358 = vadd.s32 %v355, %v357
        %vm359 = vcmp.lt.s32.totalorder %v358, 12
        %v360 = vmul.f32 %v353, %v353
        %v361 = vsel %vm359, %v360, 0.0
        %362 = vadd.xlane.f32.xlu0 %v361
        %v363 = vpop.xlane.xlu0 %362
        %v364 = vrot.slane %v363, 4
        %v365 = vadd.f32 %v363, %v364
        %v366 = vrot.slane %v365, 2
        %v367 = vadd.f32 %v365, %v366
        %v368 = vrot.slane %v367, 1
        %v369 = vadd.f32 %v367, %v368
        %s370 = vtos %v369
        %v371 = vstv %s370
        %vm372 = vcmask 0
        %373 = vst.msk [vmem:[%s261] sm:$0x1] %vm372, %v371
        %p374 = scmp.lt.s32.totalorder %s21, 1
        %s375 = scalar_select %p374, %s21, 1
        %s376 = scalar_lea.vmem %s4, %s375
        // Predicated region
        $region49: #{tpu_custom_call.1} parent=35 // pred_check
          %p377 = pneg %p133
        $region50: #{tpu_custom_call.1} parent=35 // pred_check_branch
          %379 = sbr.rel (%p377) target = $region52
        $region51: #{tpu_custom_call.1} parent=35 // pred_region
          _
        $region52: #{tpu_custom_call.1} parent=35 // pred_fallthru
          _
      $region36: #{tpu_custom_call.1} parent=5 // pred_fallthru
        _
      %p380 = scmp.le.s32.totalorder 2, %s16
      // Predicated region
      $region53: #{tpu_custom_call.1} parent=5 // pred_check
        %p381 = pneg %p380
      $region54: #{tpu_custom_call.1} parent=5 // pred_check_branch
        %383 = sbr.rel (%p381) target = $region56
      $region55: #{tpu_custom_call.1} parent=5 // pred_region
        %s384 = ssub.s32 %s16, 2
        // Predicated region
        $region57: #{tpu_custom_call.1} parent=55 // pred_check
          %p385 = pneg %p139
        $region58: #{tpu_custom_call.1} parent=55 // pred_check_branch
          %387 = sbr.rel (%p385) target = $region60
        $region59: #{tpu_custom_call.1} parent=55 // pred_region
          %p388 = scmp.lt.s32.totalorder %s22, 1
          %s389 = scalar_select %p388, %s22, 1
          %s390 = scalar_lea.vmem %s4, %s389
        $region60: #{tpu_custom_call.1} parent=55 // pred_fallthru
          _
      $region56: #{tpu_custom_call.1} parent=5 // pred_fallthru
        _
    $region6: #{tpu_custom_call.1} parent=1 // loop_footer
      %s20 = sadd.s32 1, %s16
    $region7: #{tpu_custom_call.1} parent=1 // loop_footer_branch
      %15 = sbr.rel target = $region3
    $region8: #{tpu_custom_call.1} parent=1 // loop_exit
      _
    %391 = vsyncpa [#allocation3], 1
    %s392 = scalar_lea.sflag [#allocation3], 1
    %393 = vsyncpa %s392, 1
    %394 = vsyncpa [#allocation5], 1
    %s395 = scalar_lea.sflag [#allocation5], 1
    %396 = vsyncpa %s395, 1

</llo_original>
